<compile_context>
chip_gen: v7x
topology: tpu7x:2x2x1
jax: 0.10.0
libtpu: 0.0.40
codegen_flags: <defaults>
</compile_context>

<pallas_src>
import functools

import jax
import jax.numpy as jnp
from jax.experimental import pallas as pl
from jax.experimental.pallas import tpu as pltpu


def myrnn_kernel(ids_ref, table_ref, w_ref, wd_ref, bd_ref, out_ref, *,
                 seq_len, batch, vocab_pad):
    """ids_ref:   (S*B, 1) int32, time-major flattened token ids (row = t*B + b)
    table_ref: (V_pad, H) f32, precomputed emb @ U + b (zero rows beyond vocab)
    w_ref:     (H, H) f32 recurrent weight
    wd_ref:    (H, P) f32 dense weight (transposed), bd_ref: (1, P) f32 dense bias
    out_ref:   (B, P) f32 final logits."""
    # --- Fused embedding gather (off the serial path) -----------------------------
    # xu[t*B+b, :] = table[ids[t*B+b], :] = x_t @ U + b, built as one-hot @ table on
    # the MXU: exact (each one-hot row has a single 1) and guaranteed to lower.
    ids = ids_ref[...]                                            # (S*B, 1) int32
    onehot = (ids == jax.lax.broadcasted_iota(
        jnp.int32, (seq_len * batch, vocab_pad), 1)).astype(jnp.float32)
    xu = jnp.dot(onehot, table_ref[...],
                 preferred_element_type=jnp.float32)              # (S*B, H), SSA value

    w = w_ref[...]                                                # (H, H) VMEM-resident

    # --- Serial recurrence, fully unrolled (S small & static) ---------------------
    # Each step is a single (B,H)x(H,H) MXU matmul + sigmoid; xu_t is a register-
    # resident static slice (no VMEM scratch, no sub-tile reloads on the chain).
    h = jnp.zeros((batch, w.shape[0]), jnp.float32)
    xu_t = xu[:batch, :]
    for t in range(seq_len):
        xu_t = xu[t * batch:(t + 1) * batch, :]                   # (B, H)
        h = jax.nn.sigmoid(
            xu_t + jnp.dot(h, w, preferred_element_type=jnp.float32))

    # y_T uses the already-updated h_T, exactly like the PyTorch loop body; the dense
    # head (H -> P) is fused right here (tiny masked store, no extra XLA dispatch).
    y = jax.nn.sigmoid(
        xu_t + jnp.dot(h, w, preferred_element_type=jnp.float32))
    out_ref[...] = (jnp.dot(y, wd_ref[...], preferred_element_type=jnp.float32)
                    + bd_ref[...])


def myrnn_forward(text, embedding_matrix, params):
    """text: (B, S) int32 token ids; returns (B, polarities_dim) float32 logits."""
    u, w, b, w_d, b_d = params
    B, S = text.shape
    H = w.shape[0]
    P = w_d.shape[0]
    V = embedding_matrix.shape[0]
    V_pad = ((V + 7) // 8) * 8                      # sublane-friendly table height

    # Parameter-only fused table: table[v] = emb[v] @ U + b (constant-foldable / fused
    # by XLA under jit).  Zero-pad rows to a multiple of 8; padded rows are never hit.
    table = (embedding_matrix.astype(jnp.float32) @ u.astype(jnp.float32)
             + b.astype(jnp.float32)[None, :])
    table = jnp.pad(table, ((0, V_pad - V), (0, 0)))

    # Only the tiny (B,S) token-id matrix is reshaped — time-major, row = t*B + b.
    ids = text.T.reshape(S * B, 1).astype(jnp.int32)

    return pl.pallas_call(
        functools.partial(myrnn_kernel, seq_len=S, batch=B, vocab_pad=V_pad),
        out_shape=jax.ShapeDtypeStruct((B, P), jnp.float32),
        # Single kernel invocation (no grid): everything fits and stays in VMEM.
        in_specs=[
            pl.BlockSpec(memory_space=pltpu.MemorySpace.VMEM),   # ids    (S*B, 1)
            pl.BlockSpec(memory_space=pltpu.MemorySpace.VMEM),   # table  (V_pad, H)
            pl.BlockSpec(memory_space=pltpu.MemorySpace.VMEM),   # W      (H, H)
            pl.BlockSpec(memory_space=pltpu.MemorySpace.VMEM),   # W_d^T  (H, P)
            pl.BlockSpec(memory_space=pltpu.MemorySpace.VMEM),   # b_d    (1, P)
        ],
        out_specs=pl.BlockSpec(memory_space=pltpu.MemorySpace.VMEM),
    )(ids, table, w.astype(jnp.float32),
      w_d.T.astype(jnp.float32), b_d.reshape(1, P).astype(jnp.float32))


def myrnn_reference(text, embedding_matrix, params):
    """Pure-JAX transliteration of the PyTorch MyRNN forward."""
    u, w, b, w_d, b_d = params
    x = embedding_matrix[text].astype(jnp.float32)   # (B, S, E)
    B, S, _ = x.shape
    H = w.shape[0]
    h = jnp.zeros((B, H), jnp.float32)
    y = jnp.zeros((B, H), jnp.float32)
    for t in range(S):
        x_t = x[:, t, :]
        h = jax.nn.sigmoid(x_t @ u + h @ w + b)
        y = jax.nn.sigmoid(x_t @ u + h @ w + b)
    return y @ w_d.T + b_d


if __name__ == "__main__":
    # opt: embed_dim=32, hidden_dim=32, polarities_dim=3; vocab=20; batch=2; seq=8
    VOCAB, E, H, P = 20, 32, 32, 3
    B, S = 2, 8

    key = jax.random.PRNGKey(0)
    k_emb, k_u, k_w, k_b, k_wd, k_bd, k_tok = jax.random.split(key, 7)

    embedding_matrix = jax.random.normal(k_emb, (VOCAB, E), jnp.float32) * 0.1
    embedding_matrix = embedding_matrix.at[0].set(0.0)      # padding row

    stdv = 1.0 / float(jnp.sqrt(jnp.float32(H)))
    u = jax.random.uniform(k_u, (E, H), jnp.float32, -stdv, stdv)     # myrnn.U
    w = jax.random.uniform(k_w, (H, H), jnp.float32, -stdv, stdv)     # myrnn.W
    b = jax.random.uniform(k_b, (H,), jnp.float32, -stdv, stdv)       # myrnn.b
    w_d = jax.random.uniform(k_wd, (P, H), jnp.float32, -stdv, stdv)  # dense.weight
    b_d = jax.random.uniform(k_bd, (P,), jnp.float32, -stdv, stdv)    # dense.bias
    params = (u, w, b, w_d, b_d)

    # Token ids with trailing padding (the module itself runs the recurrence over
    # every timestep regardless of padding — no length masking in the spec).
    tokens = jax.random.randint(k_tok, (B, S), 1, VOCAB, jnp.int32)
    lengths = jnp.array([5, 8], jnp.int32)
    pad_mask = jnp.arange(S)[None, :] < lengths[:, None]
    text = jnp.where(pad_mask, tokens, 0)

    fwd = jax.jit(myrnn_forward)
    out = jax.block_until_ready(fwd(text, embedding_matrix, params))
    ref = myrnn_reference(text, embedding_matrix, params)
    assert out.shape == (B, P)
    assert jnp.allclose(out, ref, rtol=1e-4, atol=1e-4), (
        f"max abs err = {float(jnp.max(jnp.abs(out - ref)))}")
    print("KERNEL_OK")
</pallas_src>

<mosaic_0001>
module attributes {stable_mosaic.version = 11 : i64} {
  func.func @myrnn_kernel(%arg0: memref<16x1xi32, #tpu.memory_space<vmem>>, %arg1: memref<24x32xf32, #tpu.memory_space<vmem>>, %arg2: memref<32x32xf32, #tpu.memory_space<vmem>>, %arg3: memref<32x3xf32, #tpu.memory_space<vmem>>, %arg4: memref<1x3xf32, #tpu.memory_space<vmem>>, %arg5: memref<2x3xf32, #tpu.memory_space<vmem>>) attributes {dimension_semantics = [], scalar_prefetch = 0 : i64, scratch_operands = 0 : i64, tpu.core_type = #tpu.core_type<tc>} {
    %c0 = arith.constant 0 : index
    %c0_0 = arith.constant 0 : index
    %0 = vector.load %arg0[%c0, %c0_0] : memref<16x1xi32, #tpu.memory_space<vmem>>, vector<16x1xi32>
    %1 = tpu.iota {dimensions = array<i32: 1>} : vector<16x24xi32>
    %2 = vector.broadcast %0 : vector<16x1xi32> to vector<16x24xi32>
    %3 = arith.cmpi eq, %2, %1 : vector<16x24xi32>
    %4 = arith.extui %3 : vector<16x24xi1> to vector<16x24xi32>
    %5 = arith.sitofp %4 : vector<16x24xi32> to vector<16x24xf32>
    %c0_1 = arith.constant 0 : index
    %c0_2 = arith.constant 0 : index
    %6 = vector.load %arg1[%c0_1, %c0_2] : memref<24x32xf32, #tpu.memory_space<vmem>>, vector<24x32xf32>
    %cst = arith.constant dense<0.000000e+00> : vector<16x32xf32>
    %7 = tpu.matmul %5, %6, %cst {dimension_numbers = #tpu.dot_dimension_numbers<[1], [0], [0], [1], [0, 0, 1, 1], [], []>} : vector<16x24xf32>, vector<24x32xf32>, vector<16x32xf32> -> vector<16x32xf32>
    %c0_3 = arith.constant 0 : index
    %c0_4 = arith.constant 0 : index
    %8 = vector.load %arg2[%c0_3, %c0_4] : memref<32x32xf32, #tpu.memory_space<vmem>>, vector<32x32xf32>
    %cst_5 = arith.constant 0.000000e+00 : f32
    %9 = vector.broadcast %cst_5 : f32 to vector<2x32xf32>
    %10 = vector.extract_strided_slice %7 {offsets = [0, 0], sizes = [2, 32], strides = [1, 1]} : vector<16x32xf32> to vector<2x32xf32>
    %cst_6 = arith.constant dense<0.000000e+00> : vector<2x32xf32>
    %11 = tpu.matmul %9, %8, %cst_6 {dimension_numbers = #tpu.dot_dimension_numbers<[1], [0], [0], [1], [0, 0, 1, 1], [], []>} : vector<2x32xf32>, vector<32x32xf32>, vector<2x32xf32> -> vector<2x32xf32>
    %12 = arith.addf %10, %11 : vector<2x32xf32>
    %13 = arith.negf %12 : vector<2x32xf32>
    %14 = math.exp %13 : vector<2x32xf32>
    %cst_7 = arith.constant 1.000000e+00 : f32
    %15 = vector.broadcast %cst_7 : f32 to vector<2x32xf32>
    %16 = arith.addf %15, %14 : vector<2x32xf32>
    %17 = arith.divf %15, %16 : vector<2x32xf32>
    %18 = vector.extract_strided_slice %7 {offsets = [2, 0], sizes = [2, 32], strides = [1, 1]} : vector<16x32xf32> to vector<2x32xf32>
    %cst_8 = arith.constant dense<0.000000e+00> : vector<2x32xf32>
    %19 = tpu.matmul %17, %8, %cst_8 {dimension_numbers = #tpu.dot_dimension_numbers<[1], [0], [0], [1], [0, 0, 1, 1], [], []>} : vector<2x32xf32>, vector<32x32xf32>, vector<2x32xf32> -> vector<2x32xf32>
    %20 = arith.addf %18, %19 : vector<2x32xf32>
    %21 = arith.negf %20 : vector<2x32xf32>
    %22 = math.exp %21 : vector<2x32xf32>
    %cst_9 = arith.constant 1.000000e+00 : f32
    %23 = vector.broadcast %cst_9 : f32 to vector<2x32xf32>
    %24 = arith.addf %23, %22 : vector<2x32xf32>
    %25 = arith.divf %23, %24 : vector<2x32xf32>
    %26 = vector.extract_strided_slice %7 {offsets = [4, 0], sizes = [2, 32], strides = [1, 1]} : vector<16x32xf32> to vector<2x32xf32>
    %cst_10 = arith.constant dense<0.000000e+00> : vector<2x32xf32>
    %27 = tpu.matmul %25, %8, %cst_10 {dimension_numbers = #tpu.dot_dimension_numbers<[1], [0], [0], [1], [0, 0, 1, 1], [], []>} : vector<2x32xf32>, vector<32x32xf32>, vector<2x32xf32> -> vector<2x32xf32>
    %28 = arith.addf %26, %27 : vector<2x32xf32>
    %29 = arith.negf %28 : vector<2x32xf32>
    %30 = math.exp %29 : vector<2x32xf32>
    %cst_11 = arith.constant 1.000000e+00 : f32
    %31 = vector.broadcast %cst_11 : f32 to vector<2x32xf32>
    %32 = arith.addf %31, %30 : vector<2x32xf32>
    %33 = arith.divf %31, %32 : vector<2x32xf32>
    %34 = vector.extract_strided_slice %7 {offsets = [6, 0], sizes = [2, 32], strides = [1, 1]} : vector<16x32xf32> to vector<2x32xf32>
    %cst_12 = arith.constant dense<0.000000e+00> : vector<2x32xf32>
    %35 = tpu.matmul %33, %8, %cst_12 {dimension_numbers = #tpu.dot_dimension_numbers<[1], [0], [0], [1], [0, 0, 1, 1], [], []>} : vector<2x32xf32>, vector<32x32xf32>, vector<2x32xf32> -> vector<2x32xf32>
    %36 = arith.addf %34, %35 : vector<2x32xf32>
    %37 = arith.negf %36 : vector<2x32xf32>
    %38 = math.exp %37 : vector<2x32xf32>
    %cst_13 = arith.constant 1.000000e+00 : f32
    %39 = vector.broadcast %cst_13 : f32 to vector<2x32xf32>
    %40 = arith.addf %39, %38 : vector<2x32xf32>
    %41 = arith.divf %39, %40 : vector<2x32xf32>
    %42 = vector.extract_strided_slice %7 {offsets = [8, 0], sizes = [2, 32], strides = [1, 1]} : vector<16x32xf32> to vector<2x32xf32>
    %cst_14 = arith.constant dense<0.000000e+00> : vector<2x32xf32>
    %43 = tpu.matmul %41, %8, %cst_14 {dimension_numbers = #tpu.dot_dimension_numbers<[1], [0], [0], [1], [0, 0, 1, 1], [], []>} : vector<2x32xf32>, vector<32x32xf32>, vector<2x32xf32> -> vector<2x32xf32>
    %44 = arith.addf %42, %43 : vector<2x32xf32>
    %45 = arith.negf %44 : vector<2x32xf32>
    %46 = math.exp %45 : vector<2x32xf32>
    %cst_15 = arith.constant 1.000000e+00 : f32
    %47 = vector.broadcast %cst_15 : f32 to vector<2x32xf32>
    %48 = arith.addf %47, %46 : vector<2x32xf32>
    %49 = arith.divf %47, %48 : vector<2x32xf32>
    %50 = vector.extract_strided_slice %7 {offsets = [10, 0], sizes = [2, 32], strides = [1, 1]} : vector<16x32xf32> to vector<2x32xf32>
    %cst_16 = arith.constant dense<0.000000e+00> : vector<2x32xf32>
    %51 = tpu.matmul %49, %8, %cst_16 {dimension_numbers = #tpu.dot_dimension_numbers<[1], [0], [0], [1], [0, 0, 1, 1], [], []>} : vector<2x32xf32>, vector<32x32xf32>, vector<2x32xf32> -> vector<2x32xf32>
    %52 = arith.addf %50, %51 : vector<2x32xf32>
    %53 = arith.negf %52 : vector<2x32xf32>
    %54 = math.exp %53 : vector<2x32xf32>
    %cst_17 = arith.constant 1.000000e+00 : f32
    %55 = vector.broadcast %cst_17 : f32 to vector<2x32xf32>
    %56 = arith.addf %55, %54 : vector<2x32xf32>
    %57 = arith.divf %55, %56 : vector<2x32xf32>
    %58 = vector.extract_strided_slice %7 {offsets = [12, 0], sizes = [2, 32], strides = [1, 1]} : vector<16x32xf32> to vector<2x32xf32>
    %cst_18 = arith.constant dense<0.000000e+00> : vector<2x32xf32>
    %59 = tpu.matmul %57, %8, %cst_18 {dimension_numbers = #tpu.dot_dimension_numbers<[1], [0], [0], [1], [0, 0, 1, 1], [], []>} : vector<2x32xf32>, vector<32x32xf32>, vector<2x32xf32> -> vector<2x32xf32>
    %60 = arith.addf %58, %59 : vector<2x32xf32>
    %61 = arith.negf %60 : vector<2x32xf32>
    %62 = math.exp %61 : vector<2x32xf32>
    %cst_19 = arith.constant 1.000000e+00 : f32
    %63 = vector.broadcast %cst_19 : f32 to vector<2x32xf32>
    %64 = arith.addf %63, %62 : vector<2x32xf32>
    %65 = arith.divf %63, %64 : vector<2x32xf32>
    %66 = vector.extract_strided_slice %7 {offsets = [14, 0], sizes = [2, 32], strides = [1, 1]} : vector<16x32xf32> to vector<2x32xf32>
    %cst_20 = arith.constant dense<0.000000e+00> : vector<2x32xf32>
    %67 = tpu.matmul %65, %8, %cst_20 {dimension_numbers = #tpu.dot_dimension_numbers<[1], [0], [0], [1], [0, 0, 1, 1], [], []>} : vector<2x32xf32>, vector<32x32xf32>, vector<2x32xf32> -> vector<2x32xf32>
    %68 = arith.addf %66, %67 : vector<2x32xf32>
    %69 = arith.negf %68 : vector<2x32xf32>
    %70 = math.exp %69 : vector<2x32xf32>
    %cst_21 = arith.constant 1.000000e+00 : f32
    %71 = vector.broadcast %cst_21 : f32 to vector<2x32xf32>
    %72 = arith.addf %71, %70 : vector<2x32xf32>
    %73 = arith.divf %71, %72 : vector<2x32xf32>
    %cst_22 = arith.constant dense<0.000000e+00> : vector<2x32xf32>
    %74 = tpu.matmul %73, %8, %cst_22 {dimension_numbers = #tpu.dot_dimension_numbers<[1], [0], [0], [1], [0, 0, 1, 1], [], []>} : vector<2x32xf32>, vector<32x32xf32>, vector<2x32xf32> -> vector<2x32xf32>
    %75 = arith.addf %66, %74 : vector<2x32xf32>
    %76 = arith.negf %75 : vector<2x32xf32>
    %77 = math.exp %76 : vector<2x32xf32>
    %cst_23 = arith.constant 1.000000e+00 : f32
    %78 = vector.broadcast %cst_23 : f32 to vector<2x32xf32>
    %79 = arith.addf %78, %77 : vector<2x32xf32>
    %80 = arith.divf %78, %79 : vector<2x32xf32>
    %c0_24 = arith.constant 0 : index
    %c0_25 = arith.constant 0 : index
    %81 = vector.load %arg3[%c0_24, %c0_25] : memref<32x3xf32, #tpu.memory_space<vmem>>, vector<32x3xf32>
    %cst_26 = arith.constant dense<0.000000e+00> : vector<2x3xf32>
    %82 = tpu.matmul %80, %81, %cst_26 {dimension_numbers = #tpu.dot_dimension_numbers<[1], [0], [0], [1], [0, 0, 1, 1], [], []>} : vector<2x32xf32>, vector<32x3xf32>, vector<2x3xf32> -> vector<2x3xf32>
    %c0_27 = arith.constant 0 : index
    %c0_28 = arith.constant 0 : index
    %83 = vector.load %arg4[%c0_27, %c0_28] : memref<1x3xf32, #tpu.memory_space<vmem>>, vector<1x3xf32>
    %84 = vector.broadcast %83 : vector<1x3xf32> to vector<2x3xf32>
    %85 = arith.addf %82, %84 : vector<2x3xf32>
    %c0_29 = arith.constant 0 : index
    %c0_30 = arith.constant 0 : index
    %86 = vector.load %arg5[%c0_29, %c0_30] : memref<2x3xf32, #tpu.memory_space<vmem>>, vector<2x3xf32>
    tpu.vector_store %arg5[%c0_29, %c0_30], %85 {strides = array<i32>} : memref<2x3xf32, #tpu.memory_space<vmem>>, vector<2x3xf32>,
    return
  }
}

</mosaic_0001>

<llo_original>
// kernel: myrnn_forward.1
$region0: #{myrnn_forward.1}
  #allocation0 [shape = 'u32[]', space=smem, size = 0x4, offset = 0x4, fixed_abs, tag = 'smem constant byte address 0x4 - core index']
  #allocation1 [shape = 'u32[144,128]{1,0:T(1,128)}', space=vmem, size = 0x12000, scoped, tag = 'internal scratch']
  %s0 = inlined_call_operand.vmem [shape: s32[16,1], index: 0, kind: input, shape index: {}]
  %s1 = inlined_call_operand.vmem [shape: f32[24,32], index: 1, kind: input, shape index: {}]
  %s2 = inlined_call_operand.vmem [shape: f32[32,32], index: 2, kind: input, shape index: {}]
  %s3 = inlined_call_operand.vmem [shape: f32[32,3], index: 3, kind: input, shape index: {}]
  %s4 = inlined_call_operand.vmem [shape: f32[1,3], index: 4, kind: input, shape index: {}]
  %s5 = inlined_call_operand.hbm [shape: f32[2,3], index: 5, kind: output, shape index: {}]
  %s6 = sld [smem:[#allocation0]]
  $region30: #{myrnn_forward.1} parent=0
    _
  %s8 = ssub.s32 1, %s6
  %s9 = scalar_select 0, %s8, %s6
  $region1: #{myrnn_forward.1} parent=0
    #allocation2 [shape = 'u8[1024]{0}', space=vmem, size = 0x400, scoped, tag = 'output window, operand 0, single buffered']
    #allocation3 [shape = 's32[1]{0}', space=sflag, size = 0x4, scoped, tag = 'scoped memory for myrnn_forward.1']
    %10 = vsyncpa [#allocation3], 0
    // Predicated region
    $region2: #{myrnn_forward.1} parent=1 // pred_check
      _
    $region3: #{myrnn_forward.1} parent=1 // pred_check_branch
      %12 = sbr.rel (0) target = $region5
    $region4: #{myrnn_forward.1} parent=1 // pred_region
      _
    $region5: #{myrnn_forward.1} parent=1 // pred_fallthru
      _
    // Predicated region
    $region6: #{myrnn_forward.1} parent=1 // pred_check
      _
    $region7: #{myrnn_forward.1} parent=1 // pred_check_branch
      %14 = sbr.rel (0) target = $region9
    $region8: #{myrnn_forward.1} parent=1 // pred_region
      _
    $region9: #{myrnn_forward.1} parent=1 // pred_fallthru
      _
    // Predicated region
    $region10: #{myrnn_forward.1} parent=1 // pred_check
      _
    $region11: #{myrnn_forward.1} parent=1 // pred_check_branch
      %16 = sbr.rel (0) target = $region13
    $region12: #{myrnn_forward.1} parent=1 // pred_region
      _
    $region13: #{myrnn_forward.1} parent=1 // pred_fallthru
      _
    // Predicated region
    $region14: #{myrnn_forward.1} parent=1 // pred_check
      _
    $region15: #{myrnn_forward.1} parent=1 // pred_check_branch
      %18 = sbr.rel (0) target = $region17
    $region16: #{myrnn_forward.1} parent=1 // pred_region
      _
    $region17: #{myrnn_forward.1} parent=1 // pred_fallthru
      _
    // Predicated region
    $region18: #{myrnn_forward.1} parent=1 // pred_check
      _
    $region19: #{myrnn_forward.1} parent=1 // pred_check_branch
      %20 = sbr.rel (0) target = $region21
    $region20: #{myrnn_forward.1} parent=1 // pred_region
      _
    $region21: #{myrnn_forward.1} parent=1 // pred_fallthru
      _
    %v21 = vld [vmem:[%s0] sm:$0xff]
    %v22 = vld [vmem:[%s0 + $0x8] sm:$0xff]
    %v23 = vlaneseq
    %v24 = vand.u32 %v23, 127
    %25 = vset.pattern.permute.xlu0 0
    %26 = vperm.xlu0 %25, %v21
    %v27 = vpop.permute.xlu0 %26
    %28 = vset.pattern.permute.xlu0 0
    %29 = vperm.xlu0 %28, %v22
    %v30 = vpop.permute.xlu0 %29
    %vm31 = vcmp.eq.s32.totalorder %v27, %v24
    %vm32 = vcmp.eq.s32.totalorder %v30, %v24
    %v33 = vsel %vm31, 1, 0
    %v34 = vsel %vm32, 1, 0
    %v35 = vcvt.s32.f32 %v33
    %v36 = vcvt.s32.f32 %v34
    %v37 = vld [vmem:[%s1] sm:$0xff]
    %v38 = vld [vmem:[%s1 + $0x8] sm:$0xff]
    %v39 = vld [vmem:[%s1 + $0x10] sm:$0xff]
    %vm40 = vcmask 195584
    %v42 = vsel %vm40, %v35, 0
    %v45 = vsel %vm40, %v36, 0
    %47 = vmatprep.subr.mxu0 0.0
    %48 = vmatpush1.msra.mxu0 %v37
    %49 = vmatprep.subr.mxu0 0.0
    %50 = vmatpush1.msra.mxu0 %v38
    %51 = vmatprep.subr.mxu0 0.0
    %52 = vmatpush1.msra.mxu0 %v39
    %53 = vmatprep.subr.mxu0 0.0
    %54 = vmatpush1.msra.mxu0 0.0
    %55 = vmatprep.subr.mxu0 0.0
    %56 = vmatpush1.msra.mxu0 0.0
    %57 = vmatprep.subr.mxu0 0.0
    %58 = vmatpush1.msra.mxu0 0.0
    %59 = vmatprep.subr.mxu0 0.0
    %60 = vmatpush1.msra.mxu0 0.0
    %61 = vmatprep.subr.mxu0 0.0
    %62 = vmatpush1.msra.mxu0 0.0
    %63 = vmatprep.subr.mxu0 0.0
    %64 = vmatpush1.msra.mxu0 0.0
    %65 = vmatprep.subr.mxu0 0.0
    %66 = vmatpush1.msra.mxu0 0.0
    %67 = vmatprep.subr.mxu0 0.0
    %68 = vmatpush1.msra.mxu0 0.0
    %69 = vmatprep.subr.mxu0 0.0
    %70 = vmatpush1.msra.mxu0 0.0
    %71 = vmatprep.subr.mxu0 0.0
    %72 = vmatpush1.msra.mxu0 0.0
    %73 = vmatprep.subr.mxu0 0.0
    %74 = vmatpush1.msra.mxu0 0.0
    %75 = vmatprep.subr.mxu0 0.0
    %76 = vmatpush1.msra.mxu0 0.0
    %77 = vmatprep.subr.mxu0 0.0
    %78 = vmatpush1.msra.mxu0 0.0
    %79 = vmatprep.subr.mxu0 0.0
    %80 = vmatpush1.msra.mxu0 0.0
    %81 = vmatprep.subr.mxu0 0.0
    %82 = vmatpush1.msra.mxu0 0.0
    %83 = vmatprep.subr.mxu0 0.0
    %84 = vmatpush1.msra.mxu0 0.0
    %85 = vmatprep.subr.mxu0 0.0
    %86 = vmatpush1.msra.mxu0 0.0
    %87 = vmatprep.subr.mxu0 0.0
    %88 = vmatpush1.msra.mxu0 0.0
    %89 = vmatprep.subr.mxu0 0.0
    %90 = vmatpush1.msra.mxu0 0.0
    %91 = vmatprep.subr.mxu0 0.0
    %92 = vmatpush1.msra.mxu0 0.0
    %93 = vmatprep.subr.mxu0 0.0
    %94 = vmatpush1.msra.mxu0 0.0
    %95 = vmatprep.subr.mxu0 0.0
    %96 = vmatpush1.msra.mxu0 0.0
    %97 = vmatprep.subr.mxu0 0.0
    %98 = vmatpush1.msra.mxu0 0.0
    %99 = vmatprep.subr.mxu0 0.0
    %100 = vmatpush1.msra.mxu0 0.0
    %101 = vmatprep.subr.mxu0 0.0
    %102 = vmatpush1.msra.mxu0 0.0
    %103 = vmatprep.subr.mxu0 0.0
    %104 = vmatpush1.msra.mxu0 0.0
    %105 = vmatprep.subr.mxu0 0.0
    %106 = vmatpush1.msra.mxu0 0.0
    %107 = vmatprep.subr.mxu0 0.0
    %108 = vmatpush1.msra.mxu0 0.0
    %109 = vmatprep.subr.mxu0 0.0
    %110 = vmatpush1.msra.mxu0 0.0
    %111 = vmatprep.mubr.f32.mxu0 0.0
    %112 = vmatmul.mubr.f32.gmra.mrb[0].mxu0 %v42
    %v113 = vpop.f32.mrb[0].mxu0
    %v114 = vadd.f32 0.0, %v113
    %v115 = vpop.f32.mrb[0].mxu0
    %116 = vmatprep.mubr.f32.mxu0 0.0
    %117 = vmatmul.mubr.f32.gmra.mrb[0].mxu0 %v45
    %v118 = vpop.f32.mrb[0].mxu0
    %v119 = vadd.f32 0.0, %v118
    %v120 = vpop.f32.mrb[0].mxu0
    %121 = vdwg.mxu0
    %v122 = vld [vmem:[%s2] sm:$0xff]
    %v123 = vld [vmem:[%s2 + $0x8] sm:$0xff]
    %v124 = vld [vmem:[%s2 + $0x10] sm:$0xff]
    %v125 = vld [vmem:[%s2 + $0x18] sm:$0xff]
    %vm126 = vcmask 261120
    %v128 = vsel %vm126, 0.0, 0
    %130 = vmatprep.subr.mxu0 0.0
    %131 = vmatpush1.msra.mxu0 %v122
    %132 = vmatprep.subr.mxu0 0.0
    %133 = vmatpush1.msra.mxu0 %v123
    %134 = vmatprep.subr.mxu0 0.0
    %135 = vmatpush1.msra.mxu0 %v124
    %136 = vmatprep.subr.mxu0 0.0
    %137 = vmatpush1.msra.mxu0 %v125
    %138 = vmatprep.subr.mxu0 0.0
    %139 = vmatpush1.msra.mxu0 0.0
    %140 = vmatprep.subr.mxu0 0.0
    %141 = vmatpush1.msra.mxu0 0.0
    %142 = vmatprep.subr.mxu0 0.0
    %143 = vmatpush1.msra.mxu0 0.0
    %144 = vmatprep.subr.mxu0 0.0
    %145 = vmatpush1.msra.mxu0 0.0
    %146 = vmatprep.subr.mxu0 0.0
    %147 = vmatpush1.msra.mxu0 0.0
    %148 = vmatprep.subr.mxu0 0.0
    %149 = vmatpush1.msra.mxu0 0.0
    %150 = vmatprep.subr.mxu0 0.0
    %151 = vmatpush1.msra.mxu0 0.0
    %152 = vmatprep.subr.mxu0 0.0
    %153 = vmatpush1.msra.mxu0 0.0
    %154 = vmatprep.subr.mxu0 0.0
    %155 = vmatpush1.msra.mxu0 0.0
    %156 = vmatprep.subr.mxu0 0.0
    %157 = vmatpush1.msra.mxu0 0.0
    %158 = vmatprep.subr.mxu0 0.0
    %159 = vmatpush1.msra.mxu0 0.0
    %160 = vmatprep.subr.mxu0 0.0
    %161 = vmatpush1.msra.mxu0 0.0
    %162 = vmatprep.subr.mxu0 0.0
    %163 = vmatpush1.msra.mxu0 0.0
    %164 = vmatprep.subr.mxu0 0.0
    %165 = vmatpush1.msra.mxu0 0.0
    %166 = vmatprep.subr.mxu0 0.0
    %167 = vmatpush1.msra.mxu0 0.0
    %168 = vmatprep.subr.mxu0 0.0
    %169 = vmatpush1.msra.mxu0 0.0
    %170 = vmatprep.subr.mxu0 0.0
    %171 = vmatpush1.msra.mxu0 0.0
    %172 = vmatprep.subr.mxu0 0.0
    %173 = vmatpush1.msra.mxu0 0.0
    %174 = vmatprep.subr.mxu0 0.0
    %175 = vmatpush1.msra.mxu0 0.0
    %176 = vmatprep.subr.mxu0 0.0
    %177 = vmatpush1.msra.mxu0 0.0
    %178 = vmatprep.subr.mxu0 0.0
    %179 = vmatpush1.msra.mxu0 0.0
    %180 = vmatprep.subr.mxu0 0.0
    %181 = vmatpush1.msra.mxu0 0.0
    %182 = vmatprep.subr.mxu0 0.0
    %183 = vmatpush1.msra.mxu0 0.0
    %184 = vmatprep.subr.mxu0 0.0
    %185 = vmatpush1.msra.mxu0 0.0
    %186 = vmatprep.subr.mxu0 0.0
    %187 = vmatpush1.msra.mxu0 0.0
    %188 = vmatprep.subr.mxu0 0.0
    %189 = vmatpush1.msra.mxu0 0.0
    %190 = vmatprep.subr.mxu0 0.0
    %191 = vmatpush1.msra.mxu0 0.0
    %192 = vmatprep.subr.mxu0 0.0
    %193 = vmatpush1.msra.mxu0 0.0
    %194 = vmatprep.mubr.f32.mxu0 0.0
    %195 = vmatmul.mubr.f32.gmra.mrb[0].mxu0 %v128
    %v196 = vpop.f32.mrb[0].mxu0
    %v197 = vadd.f32 0.0, %v196
    %v198 = vpop.f32.mrb[0].mxu0
    %199 = vdwg.mxu0
    %v200 = vadd.f32 %v114, %v197
    %v201 = vxor.u32 %v200, 2147483648
    %v202 = vmul.f32 %v201, 1.442695
    %v203 = vpow.pop %v202
    %v204 = vadd.f32 %v203, 1.0
    %v205 = vrcp.pop %v204
    %v206 = vmul.f32 1.0, %v205
    %v208 = vsel %vm126, %v206, 0
    %210 = vmatprep.subr.mxu0 0.0
    %211 = vmatpush1.msra.mxu0 %v122
    %212 = vmatprep.subr.mxu0 0.0
    %213 = vmatpush1.msra.mxu0 %v123
    %214 = vmatprep.subr.mxu0 0.0
    %215 = vmatpush1.msra.mxu0 %v124
    %216 = vmatprep.subr.mxu0 0.0
    %217 = vmatpush1.msra.mxu0 %v125
    %218 = vmatprep.subr.mxu0 0.0
    %219 = vmatpush1.msra.mxu0 0.0
    %220 = vmatprep.subr.mxu0 0.0
    %221 = vmatpush1.msra.mxu0 0.0
    %222 = vmatprep.subr.mxu0 0.0
    %223 = vmatpush1.msra.mxu0 0.0
    %224 = vmatprep.subr.mxu0 0.0
    %225 = vmatpush1.msra.mxu0 0.0
    %226 = vmatprep.subr.mxu0 0.0
    %227 = vmatpush1.msra.mxu0 0.0
    %228 = vmatprep.subr.mxu0 0.0
    %229 = vmatpush1.msra.mxu0 0.0
    %230 = vmatprep.subr.mxu0 0.0
    %231 = vmatpush1.msra.mxu0 0.0
    %232 = vmatprep.subr.mxu0 0.0
    %233 = vmatpush1.msra.mxu0 0.0
    %234 = vmatprep.subr.mxu0 0.0
    %235 = vmatpush1.msra.mxu0 0.0
    %236 = vmatprep.subr.mxu0 0.0
    %237 = vmatpush1.msra.mxu0 0.0
    %238 = vmatprep.subr.mxu0 0.0
    %239 = vmatpush1.msra.mxu0 0.0
    %240 = vmatprep.subr.mxu0 0.0
    %241 = vmatpush1.msra.mxu0 0.0
    %242 = vmatprep.subr.mxu0 0.0
    %243 = vmatpush1.msra.mxu0 0.0
    %244 = vmatprep.subr.mxu0 0.0
    %245 = vmatpush1.msra.mxu0 0.0
    %246 = vmatprep.subr.mxu0 0.0
    %247 = vmatpush1.msra.mxu0 0.0
    %248 = vmatprep.subr.mxu0 0.0
    %249 = vmatpush1.msra.mxu0 0.0
    %250 = vmatprep.subr.mxu0 0.0
    %251 = vmatpush1.msra.mxu0 0.0
    %252 = vmatprep.subr.mxu0 0.0
    %253 = vmatpush1.msra.mxu0 0.0
    %254 = vmatprep.subr.mxu0 0.0
    %255 = vmatpush1.msra.mxu0 0.0
    %256 = vmatprep.subr.mxu0 0.0
    %257 = vmatpush1.msra.mxu0 0.0
    %258 = vmatprep.subr.mxu0 0.0
    %259 = vmatpush1.msra.mxu0 0.0
    %260 = vmatprep.subr.mxu0 0.0
    %261 = vmatpush1.msra.mxu0 0.0
    %262 = vmatprep.subr.mxu0 0.0
    %263 = vmatpush1.msra.mxu0 0.0
    %264 = vmatprep.subr.mxu0 0.0
    %265 = vmatpush1.msra.mxu0 0.0
    %266 = vmatprep.subr.mxu0 0.0
    %267 = vmatpush1.msra.mxu0 0.0
    %268 = vmatprep.subr.mxu0 0.0
    %269 = vmatpush1.msra.mxu0 0.0
    %270 = vmatprep.subr.mxu0 0.0
    %271 = vmatpush1.msra.mxu0 0.0
    %272 = vmatprep.subr.mxu0 0.0
    %273 = vmatpush1.msra.mxu0 0.0
    %274 = vmatprep.mubr.f32.mxu0 0.0
    %275 = vmatmul.mubr.f32.gmra.mrb[0].mxu0 %v208
    %v276 = vpop.f32.mrb[0].mxu0
    %v277 = vadd.f32 0.0, %v276
    %v278 = vpop.f32.mrb[0].mxu0
    %279 = vdwg.mxu0
    %v281 = vrot.slane %v277, 6
    %v283 = vadd.f32 %v114, %v281
    %v284 = vxor.u32 %v283, 2147483648
    %v285 = vmul.f32 %v284, 1.442695
    %v286 = vpow.pop %v285
    %v287 = vadd.f32 %v286, 1.0
    %v288 = vrcp.pop %v287
    %v289 = vmul.f32 1.0, %v288
    %v291 = vrot.slane %v289, 2
    %v292 = vsel %vm126, %v291, 0
    %294 = vmatprep.subr.mxu0 0.0
    %295 = vmatpush1.msra.mxu0 %v122
    %296 = vmatprep.subr.mxu0 0.0
    %297 = vmatpush1.msra.mxu0 %v123
    %298 = vmatprep.subr.mxu0 0.0
    %299 = vmatpush1.msra.mxu0 %v124
    %300 = vmatprep.subr.mxu0 0.0
    %301 = vmatpush1.msra.mxu0 %v125
    %302 = vmatprep.subr.mxu0 0.0
    %303 = vmatpush1.msra.mxu0 0.0
    %304 = vmatprep.subr.mxu0 0.0
    %305 = vmatpush1.msra.mxu0 0.0
    %306 = vmatprep.subr.mxu0 0.0
    %307 = vmatpush1.msra.mxu0 0.0
    %308 = vmatprep.subr.mxu0 0.0
    %309 = vmatpush1.msra.mxu0 0.0
    %310 = vmatprep.subr.mxu0 0.0
    %311 = vmatpush1.msra.mxu0 0.0
    %312 = vmatprep.subr.mxu0 0.0
    %313 = vmatpush1.msra.mxu0 0.0
    %314 = vmatprep.subr.mxu0 0.0
    %315 = vmatpush1.msra.mxu0 0.0
    %316 = vmatprep.subr.mxu0 0.0
    %317 = vmatpush1.msra.mxu0 0.0
    %318 = vmatprep.subr.mxu0 0.0
    %319 = vmatpush1.msra.mxu0 0.0
    %320 = vmatprep.subr.mxu0 0.0
    %321 = vmatpush1.msra.mxu0 0.0
    %322 = vmatprep.subr.mxu0 0.0
    %323 = vmatpush1.msra.mxu0 0.0
    %324 = vmatprep.subr.mxu0 0.0
    %325 = vmatpush1.msra.mxu0 0.0
    %326 = vmatprep.subr.mxu0 0.0
    %327 = vmatpush1.msra.mxu0 0.0
    %328 = vmatprep.subr.mxu0 0.0
    %329 = vmatpush1.msra.mxu0 0.0
    %330 = vmatprep.subr.mxu0 0.0
    %331 = vmatpush1.msra.mxu0 0.0
    %332 = vmatprep.subr.mxu0 0.0
    %333 = vmatpush1.msra.mxu0 0.0
    %334 = vmatprep.subr.mxu0 0.0
    %335 = vmatpush1.msra.mxu0 0.0
    %336 = vmatprep.subr.mxu0 0.0
    %337 = vmatpush1.msra.mxu0 0.0
    %338 = vmatprep.subr.mxu0 0.0
    %339 = vmatpush1.msra.mxu0 0.0
    %340 = vmatprep.subr.mxu0 0.0
    %341 = vmatpush1.msra.mxu0 0.0
    %342 = vmatprep.subr.mxu0 0.0
    %343 = vmatpush1.msra.mxu0 0.0
    %344 = vmatprep.subr.mxu0 0.0
    %345 = vmatpush1.msra.mxu0 0.0
    %346 = vmatprep.subr.mxu0 0.0
    %347 = vmatpush1.msra.mxu0 0.0
    %348 = vmatprep.subr.mxu0 0.0
    %349 = vmatpush1.msra.mxu0 0.0
    %350 = vmatprep.subr.mxu0 0.0
    %351 = vmatpush1.msra.mxu0 0.0
    %352 = vmatprep.subr.mxu0 0.0
    %353 = vmatpush1.msra.mxu0 0.0
    %354 = vmatprep.subr.mxu0 0.0
    %355 = vmatpush1.msra.mxu0 0.0
    %356 = vmatprep.subr.mxu0 0.0
    %357 = vmatpush1.msra.mxu0 0.0
    %358 = vmatprep.mubr.f32.mxu0 0.0
    %359 = vmatmul.mubr.f32.gmra.mrb[0].mxu0 %v292
    %v360 = vpop.f32.mrb[0].mxu0
    %v361 = vadd.f32 0.0, %v360
    %v362 = vpop.f32.mrb[0].mxu0
    %363 = vdwg.mxu0
    %v365 = vrot.slane %v361, 4
    %v367 = vadd.f32 %v114, %v365
    %v368 = vxor.u32 %v367, 2147483648
    %v369 = vmul.f32 %v368, 1.442695
    %v370 = vpow.pop %v369
    %v371 = vadd.f32 %v370, 1.0
    %v372 = vrcp.pop %v371
    %v373 = vmul.f32 1.0, %v372
    %v375 = vrot.slane %v373, 4
    %v376 = vsel %vm126, %v375, 0
    %378 = vmatprep.subr.mxu0 0.0
    %379 = vmatpush1.msra.mxu0 %v122
    %380 = vmatprep.subr.mxu0 0.0
    %381 = vmatpush1.msra.mxu0 %v123
    %382 = vmatprep.subr.mxu0 0.0
    %383 = vmatpush1.msra.mxu0 %v124
    %384 = vmatprep.subr.mxu0 0.0
    %385 = vmatpush1.msra.mxu0 %v125
    %386 = vmatprep.subr.mxu0 0.0
    %387 = vmatpush1.msra.mxu0 0.0
    %388 = vmatprep.subr.mxu0 0.0
    %389 = vmatpush1.msra.mxu0 0.0
    %390 = vmatprep.subr.mxu0 0.0
    %391 = vmatpush1.msra.mxu0 0.0
    %392 = vmatprep.subr.mxu0 0.0
    %393 = vmatpush1.msra.mxu0 0.0
    %394 = vmatprep.subr.mxu0 0.0
    %395 = vmatpush1.msra.mxu0 0.0
    %396 = vmatprep.subr.mxu0 0.0
    %397 = vmatpush1.msra.mxu0 0.0
    %398 = vmatprep.subr.mxu0 0.0
    %399 = vmatpush1.msra.mxu0 0.0
    %400 = vmatprep.subr.mxu0 0.0
    %401 = vmatpush1.msra.mxu0 0.0
    %402 = vmatprep.subr.mxu0 0.0
    %403 = vmatpush1.msra.mxu0 0.0
    %404 = vmatprep.subr.mxu0 0.0
    %405 = vmatpush1.msra.mxu0 0.0
    %406 = vmatprep.subr.mxu0 0.0
    %407 = vmatpush1.msra.mxu0 0.0
    %408 = vmatprep.subr.mxu0 0.0
    %409 = vmatpush1.msra.mxu0 0.0
    %410 = vmatprep.subr.mxu0 0.0
    %411 = vmatpush1.msra.mxu0 0.0
    %412 = vmatprep.subr.mxu0 0.0
    %413 = vmatpush1.msra.mxu0 0.0
    %414 = vmatprep.subr.mxu0 0.0
    %415 = vmatpush1.msra.mxu0 0.0
    %416 = vmatprep.subr.mxu0 0.0
    %417 = vmatpush1.msra.mxu0 0.0
    %418 = vmatprep.subr.mxu0 0.0
    %419 = vmatpush1.msra.mxu0 0.0
    %420 = vmatprep.subr.mxu0 0.0
    %421 = vmatpush1.msra.mxu0 0.0
    %422 = vmatprep.subr.mxu0 0.0
    %423 = vmatpush1.msra.mxu0 0.0
    %424 = vmatprep.subr.mxu0 0.0
    %425 = vmatpush1.msra.mxu0 0.0
    %426 = vmatprep.subr.mxu0 0.0
    %427 = vmatpush1.msra.mxu0 0.0
    %428 = vmatprep.subr.mxu0 0.0
    %429 = vmatpush1.msra.mxu0 0.0
    %430 = vmatprep.subr.mxu0 0.0
    %431 = vmatpush1.msra.mxu0 0.0
    %432 = vmatprep.subr.mxu0 0.0
    %433 = vmatpush1.msra.mxu0 0.0
    %434 = vmatprep.subr.mxu0 0.0
    %435 = vmatpush1.msra.mxu0 0.0
    %436 = vmatprep.subr.mxu0 0.0
    %437 = vmatpush1.msra.mxu0 0.0
    %438 = vmatprep.subr.mxu0 0.0
    %439 = vmatpush1.msra.mxu0 0.0
    %440 = vmatprep.subr.mxu0 0.0
    %441 = vmatpush1.msra.mxu0 0.0
    %442 = vmatprep.mubr.f32.mxu0 0.0
    %443 = vmatmul.mubr.f32.gmra.mrb[0].mxu0 %v376
    %v444 = vpop.f32.mrb[0].mxu0
    %v445 = vadd.f32 0.0, %v444
    %v446 = vpop.f32.mrb[0].mxu0
    %447 = vdwg.mxu0
    %v449 = vrot.slane %v445, 2
    %v451 = vadd.f32 %v114, %v449
    %v452 = vxor.u32 %v451, 2147483648
    %v453 = vmul.f32 %v452, 1.442695
    %v454 = vpow.pop %v453
    %v455 = vadd.f32 %v454, 1.0
    %v456 = vrcp.pop %v455
    %v457 = vmul.f32 1.0, %v456
    %v459 = vrot.slane %v457, 6
    %v460 = vsel %vm126, %v459, 0
    %462 = vmatprep.subr.mxu0 0.0
    %463 = vmatpush1.msra.mxu0 %v122
    %464 = vmatprep.subr.mxu0 0.0
    %465 = vmatpush1.msra.mxu0 %v123
    %466 = vmatprep.subr.mxu0 0.0
    %467 = vmatpush1.msra.mxu0 %v124
    %468 = vmatprep.subr.mxu0 0.0
    %469 = vmatpush1.msra.mxu0 %v125
    %470 = vmatprep.subr.mxu0 0.0
    %471 = vmatpush1.msra.mxu0 0.0
    %472 = vmatprep.subr.mxu0 0.0
    %473 = vmatpush1.msra.mxu0 0.0
    %474 = vmatprep.subr.mxu0 0.0
    %475 = vmatpush1.msra.mxu0 0.0
    %476 = vmatprep.subr.mxu0 0.0
    %477 = vmatpush1.msra.mxu0 0.0
    %478 = vmatprep.subr.mxu0 0.0
    %479 = vmatpush1.msra.mxu0 0.0
    %480 = vmatprep.subr.mxu0 0.0
    %481 = vmatpush1.msra.mxu0 0.0
    %482 = vmatprep.subr.mxu0 0.0
    %483 = vmatpush1.msra.mxu0 0.0
    %484 = vmatprep.subr.mxu0 0.0
    %485 = vmatpush1.msra.mxu0 0.0
    %486 = vmatprep.subr.mxu0 0.0
    %487 = vmatpush1.msra.mxu0 0.0
    %488 = vmatprep.subr.mxu0 0.0
    %489 = vmatpush1.msra.mxu0 0.0
    %490 = vmatprep.subr.mxu0 0.0
    %491 = vmatpush1.msra.mxu0 0.0
    %492 = vmatprep.subr.mxu0 0.0
    %493 = vmatpush1.msra.mxu0 0.0
    %494 = vmatprep.subr.mxu0 0.0
    %495 = vmatpush1.msra.mxu0 0.0
    %496 = vmatprep.subr.mxu0 0.0
    %497 = vmatpush1.msra.mxu0 0.0
    %498 = vmatprep.subr.mxu0 0.0
    %499 = vmatpush1.msra.mxu0 0.0
    %500 = vmatprep.subr.mxu0 0.0
    %501 = vmatpush1.msra.mxu0 0.0
    %502 = vmatprep.subr.mxu0 0.0
    %503 = vmatpush1.msra.mxu0 0.0
    %504 = vmatprep.subr.mxu0 0.0
    %505 = vmatpush1.msra.mxu0 0.0
    %506 = vmatprep.subr.mxu0 0.0
    %507 = vmatpush1.msra.mxu0 0.0
    %508 = vmatprep.subr.mxu0 0.0
    %509 = vmatpush1.msra.mxu0 0.0
    %510 = vmatprep.subr.mxu0 0.0
    %511 = vmatpush1.msra.mxu0 0.0
    %512 = vmatprep.subr.mxu0 0.0
    %513 = vmatpush1.msra.mxu0 0.0
    %514 = vmatprep.subr.mxu0 0.0
    %515 = vmatpush1.msra.mxu0 0.0
    %516 = vmatprep.subr.mxu0 0.0
    %517 = vmatpush1.msra.mxu0 0.0
    %518 = vmatprep.subr.mxu0 0.0
    %519 = vmatpush1.msra.mxu0 0.0
    %520 = vmatprep.subr.mxu0 0.0
    %521 = vmatpush1.msra.mxu0 0.0
    %522 = vmatprep.subr.mxu0 0.0
    %523 = vmatpush1.msra.mxu0 0.0
    %524 = vmatprep.subr.mxu0 0.0
    %525 = vmatpush1.msra.mxu0 0.0
    %526 = vmatprep.mubr.f32.mxu0 0.0
    %527 = vmatmul.mubr.f32.gmra.mrb[0].mxu0 %v460
    %v528 = vpop.f32.mrb[0].mxu0
    %v529 = vadd.f32 0.0, %v528
    %v530 = vpop.f32.mrb[0].mxu0
    %531 = vdwg.mxu0
    %v532 = vadd.f32 %v119, %v529
    %v533 = vxor.u32 %v532, 2147483648
    %v534 = vmul.f32 %v533, 1.442695
    %v535 = vpow.pop %v534
    %v536 = vadd.f32 %v535, 1.0
    %v537 = vrcp.pop %v536
    %v538 = vmul.f32 1.0, %v537
    %v540 = vsel %vm126, %v538, 0
    %542 = vmatprep.subr.mxu0 0.0
    %543 = vmatpush1.msra.mxu0 %v122
    %544 = vmatprep.subr.mxu0 0.0
    %545 = vmatpush1.msra.mxu0 %v123
    %546 = vmatprep.subr.mxu0 0.0
    %547 = vmatpush1.msra.mxu0 %v124
    %548 = vmatprep.subr.mxu0 0.0
    %549 = vmatpush1.msra.mxu0 %v125
    %550 = vmatprep.subr.mxu0 0.0
    %551 = vmatpush1.msra.mxu0 0.0
    %552 = vmatprep.subr.mxu0 0.0
    %553 = vmatpush1.msra.mxu0 0.0
    %554 = vmatprep.subr.mxu0 0.0
    %555 = vmatpush1.msra.mxu0 0.0
    %556 = vmatprep.subr.mxu0 0.0
    %557 = vmatpush1.msra.mxu0 0.0
    %558 = vmatprep.subr.mxu0 0.0
    %559 = vmatpush1.msra.mxu0 0.0
    %560 = vmatprep.subr.mxu0 0.0
    %561 = vmatpush1.msra.mxu0 0.0
    %562 = vmatprep.subr.mxu0 0.0
    %563 = vmatpush1.msra.mxu0 0.0
    %564 = vmatprep.subr.mxu0 0.0
    %565 = vmatpush1.msra.mxu0 0.0
    %566 = vmatprep.subr.mxu0 0.0
    %567 = vmatpush1.msra.mxu0 0.0
    %568 = vmatprep.subr.mxu0 0.0
    %569 = vmatpush1.msra.mxu0 0.0
    %570 = vmatprep.subr.mxu0 0.0
    %571 = vmatpush1.msra.mxu0 0.0
    %572 = vmatprep.subr.mxu0 0.0
    %573 = vmatpush1.msra.mxu0 0.0
    %574 = vmatprep.subr.mxu0 0.0
    %575 = vmatpush1.msra.mxu0 0.0
    %576 = vmatprep.subr.mxu0 0.0
    %577 = vmatpush1.msra.mxu0 0.0
    %578 = vmatprep.subr.mxu0 0.0
    %579 = vmatpush1.msra.mxu0 0.0
    %580 = vmatprep.subr.mxu0 0.0
    %581 = vmatpush1.msra.mxu0 0.0
    %582 = vmatprep.subr.mxu0 0.0
    %583 = vmatpush1.msra.mxu0 0.0
    %584 = vmatprep.subr.mxu0 0.0
    %585 = vmatpush1.msra.mxu0 0.0
    %586 = vmatprep.subr.mxu0 0.0
    %587 = vmatpush1.msra.mxu0 0.0
    %588 = vmatprep.subr.mxu0 0.0
    %589 = vmatpush1.msra.mxu0 0.0
    %590 = vmatprep.subr.mxu0 0.0
    %591 = vmatpush1.msra.mxu0 0.0
    %592 = vmatprep.subr.mxu0 0.0
    %593 = vmatpush1.msra.mxu0 0.0
    %594 = vmatprep.subr.mxu0 0.0
    %595 = vmatpush1.msra.mxu0 0.0
    %596 = vmatprep.subr.mxu0 0.0
    %597 = vmatpush1.msra.mxu0 0.0
    %598 = vmatprep.subr.mxu0 0.0
    %599 = vmatpush1.msra.mxu0 0.0
    %600 = vmatprep.subr.mxu0 0.0
    %601 = vmatpush1.msra.mxu0 0.0
    %602 = vmatprep.subr.mxu0 0.0
    %603 = vmatpush1.msra.mxu0 0.0
    %604 = vmatprep.subr.mxu0 0.0
    %605 = vmatpush1.msra.mxu0 0.0
    %606 = vmatprep.mubr.f32.mxu0 0.0
    %607 = vmatmul.mubr.f32.gmra.mrb[0].mxu0 %v540
    %v608 = vpop.f32.mrb[0].mxu0
    %v609 = vadd.f32 0.0, %v608
    %v610 = vpop.f32.mrb[0].mxu0
    %611 = vdwg.mxu0
    %v613 = vrot.slane %v609, 6
    %v615 = vadd.f32 %v119, %v613
    %v616 = vxor.u32 %v615, 2147483648
    %v617 = vmul.f32 %v616, 1.442695
    %v618 = vpow.pop %v617
    %v619 = vadd.f32 %v618, 1.0
    %v620 = vrcp.pop %v619
    %v621 = vmul.f32 1.0, %v620
    %v623 = vrot.slane %v621, 2
    %v624 = vsel %vm126, %v623, 0
    %626 = vmatprep.subr.mxu0 0.0
    %627 = vmatpush1.msra.mxu0 %v122
    %628 = vmatprep.subr.mxu0 0.0
    %629 = vmatpush1.msra.mxu0 %v123
    %630 = vmatprep.subr.mxu0 0.0
    %631 = vmatpush1.msra.mxu0 %v124
    %632 = vmatprep.subr.mxu0 0.0
    %633 = vmatpush1.msra.mxu0 %v125
    %634 = vmatprep.subr.mxu0 0.0
    %635 = vmatpush1.msra.mxu0 0.0
    %636 = vmatprep.subr.mxu0 0.0
    %637 = vmatpush1.msra.mxu0 0.0
    %638 = vmatprep.subr.mxu0 0.0
    %639 = vmatpush1.msra.mxu0 0.0
    %640 = vmatprep.subr.mxu0 0.0
    %641 = vmatpush1.msra.mxu0 0.0
    %642 = vmatprep.subr.mxu0 0.0
    %643 = vmatpush1.msra.mxu0 0.0
    %644 = vmatprep.subr.mxu0 0.0
    %645 = vmatpush1.msra.mxu0 0.0
    %646 = vmatprep.subr.mxu0 0.0
    %647 = vmatpush1.msra.mxu0 0.0
    %648 = vmatprep.subr.mxu0 0.0
    %649 = vmatpush1.msra.mxu0 0.0
    %650 = vmatprep.subr.mxu0 0.0
    %651 = vmatpush1.msra.mxu0 0.0
    %652 = vmatprep.subr.mxu0 0.0
    %653 = vmatpush1.msra.mxu0 0.0
    %654 = vmatprep.subr.mxu0 0.0
    %655 = vmatpush1.msra.mxu0 0.0
    %656 = vmatprep.subr.mxu0 0.0
    %657 = vmatpush1.msra.mxu0 0.0
    %658 = vmatprep.subr.mxu0 0.0
    %659 = vmatpush1.msra.mxu0 0.0
    %660 = vmatprep.subr.mxu0 0.0
    %661 = vmatpush1.msra.mxu0 0.0
    %662 = vmatprep.subr.mxu0 0.0
    %663 = vmatpush1.msra.mxu0 0.0
    %664 = vmatprep.subr.mxu0 0.0
    %665 = vmatpush1.msra.mxu0 0.0
    %666 = vmatprep.subr.mxu0 0.0
    %667 = vmatpush1.msra.mxu0 0.0
    %668 = vmatprep.subr.mxu0 0.0
    %669 = vmatpush1.msra.mxu0 0.0
    %670 = vmatprep.subr.mxu0 0.0
    %671 = vmatpush1.msra.mxu0 0.0
    %672 = vmatprep.subr.mxu0 0.0
    %673 = vmatpush1.msra.mxu0 0.0
    %674 = vmatprep.subr.mxu0 0.0
    %675 = vmatpush1.msra.mxu0 0.0
    %676 = vmatprep.subr.mxu0 0.0
    %677 = vmatpush1.msra.mxu0 0.0
    %678 = vmatprep.subr.mxu0 0.0
    %679 = vmatpush1.msra.mxu0 0.0
    %680 = vmatprep.subr.mxu0 0.0
    %681 = vmatpush1.msra.mxu0 0.0
    %682 = vmatprep.subr.mxu0 0.0
    %683 = vmatpush1.msra.mxu0 0.0
    %684 = vmatprep.subr.mxu0 0.0
    %685 = vmatpush1.msra.mxu0 0.0
    %686 = vmatprep.subr.mxu0 0.0
    %687 = vmatpush1.msra.mxu0 0.0
    %688 = vmatprep.subr.mxu0 0.0
    %689 = vmatpush1.msra.mxu0 0.0
    %690 = vmatprep.mubr.f32.mxu0 0.0
    %691 = vmatmul.mubr.f32.gmra.mrb[0].mxu0 %v624
    %v692 = vpop.f32.mrb[0].mxu0
    %v693 = vadd.f32 0.0, %v692
    %v694 = vpop.f32.mrb[0].mxu0
    %695 = vdwg.mxu0
    %v697 = vrot.slane %v693, 4
    %v699 = vadd.f32 %v119, %v697
    %v700 = vxor.u32 %v699, 2147483648
    %v701 = vmul.f32 %v700, 1.442695
    %v702 = vpow.pop %v701
    %v703 = vadd.f32 %v702, 1.0
    %v704 = vrcp.pop %v703
    %v705 = vmul.f32 1.0, %v704
    %v707 = vrot.slane %v705, 4
    %v708 = vsel %vm126, %v707, 0
    %710 = vmatprep.subr.mxu0 0.0
    %711 = vmatpush1.msra.mxu0 %v122
    %712 = vmatprep.subr.mxu0 0.0
    %713 = vmatpush1.msra.mxu0 %v123
    %714 = vmatprep.subr.mxu0 0.0
    %715 = vmatpush1.msra.mxu0 %v124
    %716 = vmatprep.subr.mxu0 0.0
    %717 = vmatpush1.msra.mxu0 %v125
    %718 = vmatprep.subr.mxu0 0.0
    %719 = vmatpush1.msra.mxu0 0.0
    %720 = vmatprep.subr.mxu0 0.0
    %721 = vmatpush1.msra.mxu0 0.0
    %722 = vmatprep.subr.mxu0 0.0
    %723 = vmatpush1.msra.mxu0 0.0
    %724 = vmatprep.subr.mxu0 0.0
    %725 = vmatpush1.msra.mxu0 0.0
    %726 = vmatprep.subr.mxu0 0.0
    %727 = vmatpush1.msra.mxu0 0.0
    %728 = vmatprep.subr.mxu0 0.0
    %729 = vmatpush1.msra.mxu0 0.0
    %730 = vmatprep.subr.mxu0 0.0
    %731 = vmatpush1.msra.mxu0 0.0
    %732 = vmatprep.subr.mxu0 0.0
    %733 = vmatpush1.msra.mxu0 0.0
    %734 = vmatprep.subr.mxu0 0.0
    %735 = vmatpush1.msra.mxu0 0.0
    %736 = vmatprep.subr.mxu0 0.0
    %737 = vmatpush1.msra.mxu0 0.0
    %738 = vmatprep.subr.mxu0 0.0
    %739 = vmatpush1.msra.mxu0 0.0
    %740 = vmatprep.subr.mxu0 0.0
    %741 = vmatpush1.msra.mxu0 0.0
    %742 = vmatprep.subr.mxu0 0.0
    %743 = vmatpush1.msra.mxu0 0.0
    %744 = vmatprep.subr.mxu0 0.0
    %745 = vmatpush1.msra.mxu0 0.0
    %746 = vmatprep.subr.mxu0 0.0
    %747 = vmatpush1.msra.mxu0 0.0
    %748 = vmatprep.subr.mxu0 0.0
    %749 = vmatpush1.msra.mxu0 0.0
    %750 = vmatprep.subr.mxu0 0.0
    %751 = vmatpush1.msra.mxu0 0.0
    %752 = vmatprep.subr.mxu0 0.0
    %753 = vmatpush1.msra.mxu0 0.0
    %754 = vmatprep.subr.mxu0 0.0
    %755 = vmatpush1.msra.mxu0 0.0
    %756 = vmatprep.subr.mxu0 0.0
    %757 = vmatpush1.msra.mxu0 0.0
    %758 = vmatprep.subr.mxu0 0.0
    %759 = vmatpush1.msra.mxu0 0.0
    %760 = vmatprep.subr.mxu0 0.0
    %761 = vmatpush1.msra.mxu0 0.0
    %762 = vmatprep.subr.mxu0 0.0
    %763 = vmatpush1.msra.mxu0 0.0
    %764 = vmatprep.subr.mxu0 0.0
    %765 = vmatpush1.msra.mxu0 0.0
    %766 = vmatprep.subr.mxu0 0.0
    %767 = vmatpush1.msra.mxu0 0.0
    %768 = vmatprep.subr.mxu0 0.0
    %769 = vmatpush1.msra.mxu0 0.0
    %770 = vmatprep.subr.mxu0 0.0
    %771 = vmatpush1.msra.mxu0 0.0
    %772 = vmatprep.subr.mxu0 0.0
    %773 = vmatpush1.msra.mxu0 0.0
    %774 = vmatprep.mubr.f32.mxu0 0.0
    %775 = vmatmul.mubr.f32.gmra.mrb[0].mxu0 %v708
    %v776 = vpop.f32.mrb[0].mxu0
    %v777 = vadd.f32 0.0, %v776
    %v778 = vpop.f32.mrb[0].mxu0
    %779 = vdwg.mxu0
    %v781 = vrot.slane %v777, 2
    %v783 = vadd.f32 %v119, %v781
    %v784 = vxor.u32 %v783, 2147483648
    %v785 = vmul.f32 %v784, 1.442695
    %v786 = vpow.pop %v785
    %v787 = vadd.f32 %v786, 1.0
    %v788 = vrcp.pop %v787
    %v789 = vmul.f32 1.0, %v788
    %v791 = vrot.slane %v789, 6
    %v792 = vsel %vm126, %v791, 0
    %794 = vmatprep.subr.mxu0 0.0
    %795 = vmatpush1.msra.mxu0 %v122
    %796 = vmatprep.subr.mxu0 0.0
    %797 = vmatpush1.msra.mxu0 %v123
    %798 = vmatprep.subr.mxu0 0.0
    %799 = vmatpush1.msra.mxu0 %v124
    %800 = vmatprep.subr.mxu0 0.0
    %801 = vmatpush1.msra.mxu0 %v125
    %802 = vmatprep.subr.mxu0 0.0
    %803 = vmatpush1.msra.mxu0 0.0
    %804 = vmatprep.subr.mxu0 0.0
    %805 = vmatpush1.msra.mxu0 0.0
    %806 = vmatprep.subr.mxu0 0.0
    %807 = vmatpush1.msra.mxu0 0.0
    %808 = vmatprep.subr.mxu0 0.0
    %809 = vmatpush1.msra.mxu0 0.0
    %810 = vmatprep.subr.mxu0 0.0
    %811 = vmatpush1.msra.mxu0 0.0
    %812 = vmatprep.subr.mxu0 0.0
    %813 = vmatpush1.msra.mxu0 0.0
    %814 = vmatprep.subr.mxu0 0.0
    %815 = vmatpush1.msra.mxu0 0.0
    %816 = vmatprep.subr.mxu0 0.0
    %817 = vmatpush1.msra.mxu0 0.0
    %818 = vmatprep.subr.mxu0 0.0
    %819 = vmatpush1.msra.mxu0 0.0
    %820 = vmatprep.subr.mxu0 0.0
    %821 = vmatpush1.msra.mxu0 0.0
    %822 = vmatprep.subr.mxu0 0.0
    %823 = vmatpush1.msra.mxu0 0.0
    %824 = vmatprep.subr.mxu0 0.0
    %825 = vmatpush1.msra.mxu0 0.0
    %826 = vmatprep.subr.mxu0 0.0
    %827 = vmatpush1.msra.mxu0 0.0
    %828 = vmatprep.subr.mxu0 0.0
    %829 = vmatpush1.msra.mxu0 0.0
    %830 = vmatprep.subr.mxu0 0.0
    %831 = vmatpush1.msra.mxu0 0.0
    %832 = vmatprep.subr.mxu0 0.0
    %833 = vmatpush1.msra.mxu0 0.0
    %834 = vmatprep.subr.mxu0 0.0
    %835 = vmatpush1.msra.mxu0 0.0
    %836 = vmatprep.subr.mxu0 0.0
    %837 = vmatpush1.msra.mxu0 0.0
    %838 = vmatprep.subr.mxu0 0.0
    %839 = vmatpush1.msra.mxu0 0.0
    %840 = vmatprep.subr.mxu0 0.0
    %841 = vmatpush1.msra.mxu0 0.0
    %842 = vmatprep.subr.mxu0 0.0
    %843 = vmatpush1.msra.mxu0 0.0
    %844 = vmatprep.subr.mxu0 0.0
    %845 = vmatpush1.msra.mxu0 0.0
    %846 = vmatprep.subr.mxu0 0.0
    %847 = vmatpush1.msra.mxu0 0.0
    %848 = vmatprep.subr.mxu0 0.0
    %849 = vmatpush1.msra.mxu0 0.0
    %850 = vmatprep.subr.mxu0 0.0
    %851 = vmatpush1.msra.mxu0 0.0
    %852 = vmatprep.subr.mxu0 0.0
    %853 = vmatpush1.msra.mxu0 0.0
    %854 = vmatprep.subr.mxu0 0.0
    %855 = vmatpush1.msra.mxu0 0.0
    %856 = vmatprep.subr.mxu0 0.0
    %857 = vmatpush1.msra.mxu0 0.0
    %858 = vmatprep.mubr.f32.mxu0 0.0
    %859 = vmatmul.mubr.f32.gmra.mrb[0].mxu0 %v792
    %v860 = vpop.f32.mrb[0].mxu0
    %v861 = vadd.f32 0.0, %v860
    %v862 = vpop.f32.mrb[0].mxu0
    %863 = vdwg.mxu0
    %v865 = vrot.slane %v861, 2
    %v867 = vadd.f32 %v119, %v865
    %v868 = vxor.u32 %v867, 2147483648
    %v869 = vmul.f32 %v868, 1.442695
    %v870 = vpow.pop %v869
    %v871 = vadd.f32 %v870, 1.0
    %v872 = vrcp.pop %v871
    %v873 = vmul.f32 1.0, %v872
    %v874 = vld [vmem:[%s3] sm:$0xff]
    %v875 = vld [vmem:[%s3 + $0x8] sm:$0xff]
    %v876 = vld [vmem:[%s3 + $0x10] sm:$0xff]
    %v877 = vld [vmem:[%s3 + $0x18] sm:$0xff]
    %v878 = vld [vmem:[%s4] sm:$0x1]
    %v880 = vlaneseq
    %v881 = vshrl.u32 %v880, 7
    %v882 = vsub.s32 0, %v881
    %v883 = vrot.slane %v878, %v882
    %v886 = vrot.slane %v873, 6
    %v887 = vsel %vm126, %v886, 0
    %889 = vmatprep.subr.mxu0 0.0
    %890 = vmatpush1.msra.mxu0 %v874
    %891 = vmatprep.subr.mxu0 0.0
    %892 = vmatpush1.msra.mxu0 %v875
    %893 = vmatprep.subr.mxu0 0.0
    %894 = vmatpush1.msra.mxu0 %v876
    %895 = vmatprep.subr.mxu0 0.0
    %896 = vmatpush1.msra.mxu0 %v877
    %897 = vmatprep.subr.mxu0 0.0
    %898 = vmatpush1.msra.mxu0 0.0
    %899 = vmatprep.subr.mxu0 0.0
    %900 = vmatpush1.msra.mxu0 0.0
    %901 = vmatprep.subr.mxu0 0.0
    %902 = vmatpush1.msra.mxu0 0.0
    %903 = vmatprep.subr.mxu0 0.0
    %904 = vmatpush1.msra.mxu0 0.0
    %905 = vmatprep.subr.mxu0 0.0
    %906 = vmatpush1.msra.mxu0 0.0
    %907 = vmatprep.subr.mxu0 0.0
    %908 = vmatpush1.msra.mxu0 0.0
    %909 = vmatprep.subr.mxu0 0.0
    %910 = vmatpush1.msra.mxu0 0.0
    %911 = vmatprep.subr.mxu0 0.0
    %912 = vmatpush1.msra.mxu0 0.0
    %913 = vmatprep.subr.mxu0 0.0
    %914 = vmatpush1.msra.mxu0 0.0
    %915 = vmatprep.subr.mxu0 0.0
    %916 = vmatpush1.msra.mxu0 0.0
    %917 = vmatprep.subr.mxu0 0.0
    %918 = vmatpush1.msra.mxu0 0.0
    %919 = vmatprep.subr.mxu0 0.0
    %920 = vmatpush1.msra.mxu0 0.0
    %921 = vmatprep.subr.mxu0 0.0
    %922 = vmatpush1.msra.mxu0 0.0
    %923 = vmatprep.subr.mxu0 0.0
    %924 = vmatpush1.msra.mxu0 0.0
    %925 = vmatprep.subr.mxu0 0.0
    %926 = vmatpush1.msra.mxu0 0.0
    %927 = vmatprep.subr.mxu0 0.0
    %928 = vmatpush1.msra.mxu0 0.0
    %929 = vmatprep.subr.mxu0 0.0
    %930 = vmatpush1.msra.mxu0 0.0
    %931 = vmatprep.subr.mxu0 0.0
    %932 = vmatpush1.msra.mxu0 0.0
    %933 = vmatprep.subr.mxu0 0.0
    %934 = vmatpush1.msra.mxu0 0.0
    %935 = vmatprep.subr.mxu0 0.0
    %936 = vmatpush1.msra.mxu0 0.0
    %937 = vmatprep.subr.mxu0 0.0
    %938 = vmatpush1.msra.mxu0 0.0
    %939 = vmatprep.subr.mxu0 0.0
    %940 = vmatpush1.msra.mxu0 0.0
    %941 = vmatprep.subr.mxu0 0.0
    %942 = vmatpush1.msra.mxu0 0.0
    %943 = vmatprep.subr.mxu0 0.0
    %944 = vmatpush1.msra.mxu0 0.0
    %945 = vmatprep.subr.mxu0 0.0
    %946 = vmatpush1.msra.mxu0 0.0
    %947 = vmatprep.subr.mxu0 0.0
    %948 = vmatpush1.msra.mxu0 0.0
    %949 = vmatprep.subr.mxu0 0.0
    %950 = vmatpush1.msra.mxu0 0.0
    %951 = vmatprep.subr.mxu0 0.0
    %952 = vmatpush1.msra.mxu0 0.0
    %953 = vmatprep.mubr.f32.mxu0 0.0
    %954 = vmatmul.mubr.f32.gmra.mrb[0].mxu0 %v887
    %v955 = vpop.f32.mrb[0].mxu0
    %v956 = vadd.f32 %v883, %v955
    %v957 = vpop.f32.mrb[0].mxu0
    %958 = vdwg.mxu0
    %vm959 = vcmask 17408
    %960 = vst.msk [vmem:[#allocation2] sm:$0x3] %vm959, %v956
    // Predicated region
    $region22: #{myrnn_forward.1} parent=1 // pred_check
      _
    $region23: #{myrnn_forward.1} parent=1 // pred_check_branch
      %962 = sbr.rel (0) target = $region25
    $region24: #{myrnn_forward.1} parent=1 // pred_region
      %s964 = ssub.s32 32, 32
      %965 = vsyncadd [#allocation3], %s964
      %s967 = sshll.u32 [#allocation2], 4
      %s968 = int_to_ptr.vmem [resolvable:$true] %s967
      %970 = dma.vmem_to_hbm [thread:$0]  %s968, 32, %s5, [#allocation3]
    $region25: #{myrnn_forward.1} parent=1 // pred_fallthru
      _
    // Predicated region
    $region26: #{myrnn_forward.1} parent=1 // pred_check
      _
    $region27: #{myrnn_forward.1} parent=1 // pred_check_branch
      %972 = sbr.rel (0) target = $region29
    $region28: #{myrnn_forward.1} parent=1 // pred_region
      %973 = dma.done [#allocation3], 32
    $region29: #{myrnn_forward.1} parent=1 // pred_fallthru
      _
    %974 = vsyncpa [#allocation3], 1

</llo_original>
